<compile_context>
chip_gen: v6e
topology: v6e:2x2x1
jax: 0.10.0
libtpu: 0.0.40
codegen_flags: <defaults>
</compile_context>

<pallas_src>
import functools

import jax
import jax.numpy as jnp
from jax import lax
from jax.experimental import pallas as pl
from jax.experimental.pallas import tpu as pltpu


def _make_embeddings_kernel(tb, d_model, type_vocab, eps):
    eps = float(eps)                 # Python float -> literal (NOT a captured f32[] const)
    inv_d = 1.0 / float(d_model)
    n_groups = tb // 8

    def kernel(ids_ref,                        # (batch, seq_p) int32, SMEM scalar prefetch
               word_ref, type_ref, pos_ref,    # word/type tables resident; pos: (tb, d) tile
               tt_ref,                         # (tb, 1) int32 token-type ids for this tile
               gamma_ref, beta_ref,            # (1, d) LayerNorm affine params
               out_ref):                       # (tb, d) output tile
        b = pl.program_id(0)
        base = pl.program_id(1) * tb

        # Hoist loop-invariant broadcasts (JAX does not CSE broadcast_in_dim).
        gamma8 = jnp.broadcast_to(gamma_ref[...].astype(jnp.float32), (8, d_model))
        beta8 = jnp.broadcast_to(beta_ref[...].astype(jnp.float32), (8, d_model))
        type_rows = [
            jnp.broadcast_to(type_ref[v:v + 1, :].astype(jnp.float32), (8, d_model))
            for v in range(type_vocab)
        ]

        def group_body(g, carry):
            g8 = pl.multiple_of(g * 8, 8)

            # Word-embedding gather: 8 dynamic single-row reads -> one (8, d) slab.
            rows = []
            for t in range(8):
                tok_id = ids_ref[b, base + g8 + t]
                rows.append(word_ref[pl.ds(tok_id, 1), :])
            w = jnp.concatenate(rows, axis=0).astype(jnp.float32)

            # Token-type embedding: vectorized select over the (tiny) type vocab.
            tt = tt_ref[pl.ds(g8, 8), :]                       # (8, 1) int32
            ty = type_rows[0]
            for v in range(1, type_vocab):
                ty = jnp.where(tt == v, type_rows[v], ty)

            # Position embedding: contiguous rows of the pipelined tile -> plain load.
            p = pos_ref[pl.ds(g8, 8), :].astype(jnp.float32)

            x = w + ty + p

            # LayerNorm (one-pass statistics: sum and sum-of-squares).
            s1 = jnp.sum(x, axis=-1, keepdims=True)
            s2 = jnp.sum(x * x, axis=-1, keepdims=True)
            mean = s1 * inv_d
            var = s2 * inv_d - mean * mean
            inv = lax.rsqrt(var + eps)
            y = (x - mean) * inv * gamma8 + beta8

            # Dropout in eval mode == identity. Full 8-sublane unmasked store.
            out_ref[pl.ds(g8, 8), :] = y.astype(out_ref.dtype)
            return carry

        lax.fori_loop(0, n_groups, group_body, 0,
                      unroll=n_groups if n_groups <= 8 else 8)

    return kernel


@functools.partial(jax.jit, static_argnames=("eps", "tb"))
def bert_embeddings(input_ids, token_type_ids, word_table, pos_table, type_table,
                    gamma, beta, *, eps=1e-12, tb=256):
    """input_ids, token_type_ids: (batch, seq) int32 -> (batch, seq, d_model)."""
    batch, seq = input_ids.shape
    vocab, d_model = word_table.shape
    max_pos = pos_table.shape[0]
    type_vocab = type_table.shape[0]
    assert max_pos >= seq, "seq_len exceeds max_position_embeddings"
    assert d_model % 128 == 0, "d_model must be a multiple of 128 for lane-dense tiles"

    if token_type_ids is None:
        token_type_ids = jnp.zeros((batch, seq), dtype=jnp.int32)

    # Token tile: multiple of 8, capped to the 8-padded sequence length.
    seq8 = pl.cdiv(seq, 8) * 8
    tb_eff = max(8, min((tb // 8) * 8, seq8))
    seq_p = pl.cdiv(seq, tb_eff) * tb_eff
    pad = seq_p - seq

    ids = input_ids.astype(jnp.int32)
    tts = token_type_ids.astype(jnp.int32)
    if pad:
        ids = jnp.pad(ids, ((0, 0), (0, pad)))
        tts = jnp.pad(tts, ((0, 0), (0, pad)))
    if max_pos >= seq_p:
        pos_used = pos_table[:seq_p]
    else:
        pos_used = jnp.pad(pos_table[:seq], ((0, seq_p - seq), (0, 0)))
    tts3 = tts.reshape(batch, seq_p, 1)

    gamma2 = gamma.reshape(1, d_model)
    beta2 = beta.reshape(1, d_model)

    kernel = _make_embeddings_kernel(tb_eff, d_model, type_vocab, float(eps))

    out = pl.pallas_call(
        kernel,
        out_shape=jax.ShapeDtypeStruct((batch, seq_p, d_model), word_table.dtype),
        grid_spec=pltpu.PrefetchScalarGridSpec(
            num_scalar_prefetch=1,                    # token ids -> SMEM
            grid=(batch, seq_p // tb_eff),
            in_specs=[
                pl.BlockSpec((vocab, d_model), lambda b, s, *_: (0, 0)),        # word table (resident)
                pl.BlockSpec((type_vocab, d_model), lambda b, s, *_: (0, 0)),   # token-type table
                pl.BlockSpec((tb_eff, d_model), lambda b, s, *_: (s, 0)),       # position rows (contiguous)
                pl.BlockSpec((None, tb_eff, 1), lambda b, s, *_: (b, s, 0)),    # token-type ids
                pl.BlockSpec((1, d_model), lambda b, s, *_: (0, 0)),            # gamma
                pl.BlockSpec((1, d_model), lambda b, s, *_: (0, 0)),            # beta
            ],
            out_specs=pl.BlockSpec((None, tb_eff, d_model), lambda b, s, *_: (b, s, 0)),
        ),
        compiler_params=pltpu.CompilerParams(
            dimension_semantics=("parallel", "parallel"),   # independent tiles -> megacore
        ),
    )(ids, word_table, type_table, pos_used, tts3, gamma2, beta2)

    if pad:
        out = out[:, :seq, :]
    return out


if __name__ == "__main__":
    # Small shapes consistent with the module; d_model=128 keeps tiles lane-dense.
    batch, seq = 2, 16
    d_model = 128
    vocab_size = 64
    max_position_embeddings = 32
    type_vocab_size = 2
    pad_token_id = 0
    eps = 1e-12

    key = jax.random.PRNGKey(0)
    k_ids, k_tt, k_w, k_p, k_t, k_g, k_b = jax.random.split(key, 7)

    input_ids = jax.random.randint(k_ids, (batch, seq), 0, vocab_size, dtype=jnp.int32)
    token_type_ids = jax.random.randint(k_tt, (batch, seq), 0, type_vocab_size, dtype=jnp.int32)

    word_table = 0.02 * jax.random.normal(k_w, (vocab_size, d_model), jnp.float32)
    word_table = word_table.at[pad_token_id].set(0.0)   # padding_idx row is zeros
    pos_table = 0.02 * jax.random.normal(k_p, (max_position_embeddings, d_model), jnp.float32)
    type_table = 0.02 * jax.random.normal(k_t, (type_vocab_size, d_model), jnp.float32)
    gamma = 1.0 + 0.1 * jax.random.normal(k_g, (d_model,), jnp.float32)
    beta = 0.1 * jax.random.normal(k_b, (d_model,), jnp.float32)

    out = bert_embeddings(input_ids, token_type_ids, word_table, pos_table, type_table,
                          gamma, beta, eps=eps, tb=256)
    out = jax.block_until_ready(out)

    # Plain-JAX reference (dropout = identity in eval mode).
    pos_ids = jnp.arange(seq)
    emb = (word_table[input_ids]
           + type_table[token_type_ids]
           + pos_table[pos_ids][None, :, :])
    mean = emb.mean(-1, keepdims=True)
    var = ((emb - mean) ** 2).mean(-1, keepdims=True)
    ref = (emb - mean) / jnp.sqrt(var + eps) * gamma + beta

    assert out.shape == (batch, seq, d_model)
    assert jnp.allclose(out, ref, atol=1e-4, rtol=1e-4), "mismatch vs reference"

    print("KERNEL_OK")
</pallas_src>

<mosaic_0001>
module attributes {stable_mosaic.version = 11 : i64} {
  func.func @kernel(%arg0: i32, %arg1: i32, %arg2: memref<2x16xi32, #tpu.memory_space<smem>>, %arg3: memref<64x128xf32, #tpu.memory_space<vmem>>, %arg4: memref<2x128xf32, #tpu.memory_space<vmem>>, %arg5: memref<16x128xf32, #tpu.memory_space<vmem>>, %arg6: memref<1x16x1xi32, #tpu.memory_space<vmem>>, %arg7: memref<1x128xf32, #tpu.memory_space<vmem>>, %arg8: memref<1x128xf32, #tpu.memory_space<vmem>>, %arg9: memref<1x16x128xf32, #tpu.memory_space<vmem>>) attributes {dimension_semantics = [#tpu.dimension_semantics<parallel>, #tpu.dimension_semantics<parallel>], iteration_bounds = array<i64: 2, 1>, scalar_prefetch = 1 : i64, scratch_operands = 0 : i64, tpu.core_type = #tpu.core_type<tc>, window_params = [{pipeline_mode = #tpu.pipeline_mode<synchronous>, transform_indices = @transform_0, window_bounds = array<i64: 64, 128>}, {pipeline_mode = #tpu.pipeline_mode<synchronous>, transform_indices = @transform_1, window_bounds = array<i64: 2, 128>}, {transform_indices = @transform_2, window_bounds = array<i64: 16, 128>}, {transform_indices = @transform_3, window_bounds = array<i64: 1, 16, 1>}, {pipeline_mode = #tpu.pipeline_mode<synchronous>, transform_indices = @transform_4, window_bounds = array<i64: 1, 128>}, {pipeline_mode = #tpu.pipeline_mode<synchronous>, transform_indices = @transform_5, window_bounds = array<i64: 1, 128>}, {transform_indices = @transform_6, window_bounds = array<i64: 1, 16, 128>}]} {
    %c16_i32 = arith.constant 16 : i32
    %0 = arith.muli %arg1, %c16_i32 : i32
    %c0 = arith.constant 0 : index
    %c0_0 = arith.constant 0 : index
    %1 = vector.load %arg7[%c0, %c0_0] : memref<1x128xf32, #tpu.memory_space<vmem>>, vector<1x128xf32>
    %2 = vector.shape_cast %1 : vector<1x128xf32> to vector<1x128xf32>
    %3 = vector.broadcast %2 : vector<1x128xf32> to vector<8x128xf32>
    %c0_1 = arith.constant 0 : index
    %c0_2 = arith.constant 0 : index
    %4 = vector.load %arg8[%c0_1, %c0_2] : memref<1x128xf32, #tpu.memory_space<vmem>>, vector<1x128xf32>
    %5 = vector.shape_cast %4 : vector<1x128xf32> to vector<1x128xf32>
    %6 = vector.broadcast %5 : vector<1x128xf32> to vector<8x128xf32>
    %c0_3 = arith.constant 0 : index
    %c0_4 = arith.constant 0 : index
    %7 = vector.load %arg4[%c0_3, %c0_4] : memref<2x128xf32, #tpu.memory_space<vmem>>, vector<1x128xf32>
    %8 = vector.shape_cast %7 : vector<1x128xf32> to vector<1x128xf32>
    %9 = vector.broadcast %8 : vector<1x128xf32> to vector<8x128xf32>
    %c1 = arith.constant 1 : index
    %c0_5 = arith.constant 0 : index
    %10 = vector.load %arg4[%c1, %c0_5] : memref<2x128xf32, #tpu.memory_space<vmem>>, vector<1x128xf32>
    %11 = vector.shape_cast %10 : vector<1x128xf32> to vector<1x128xf32>
    %12 = vector.broadcast %11 : vector<1x128xf32> to vector<8x128xf32>
    %c0_i32 = arith.constant 0 : i32
    %c8_i32 = arith.constant 8 : i32
    %13 = arith.muli %c0_i32, %c8_i32 : i32
    %14 = tpu.assume_multiple %13, 8 : i32
    %15 = arith.addi %0, %14 : i32
    %c0_i32_6 = arith.constant 0 : i32
    %16 = arith.addi %15, %c0_i32_6 : i32
    %17 = arith.index_cast %arg0 : i32 to index
    %18 = arith.index_cast %16 : i32 to index
    %19 = memref.load %arg2[%17, %18] : memref<2x16xi32, #tpu.memory_space<smem>>
    %20 = arith.index_cast %19 : i32 to index
    %c0_7 = arith.constant 0 : index
    %21 = vector.load %arg3[%20, %c0_7] : memref<64x128xf32, #tpu.memory_space<vmem>>, vector<1x128xf32>
    %22 = arith.addi %0, %14 : i32
    %c1_i32 = arith.constant 1 : i32
    %23 = arith.addi %22, %c1_i32 : i32
    %24 = arith.index_cast %arg0 : i32 to index
    %25 = arith.index_cast %23 : i32 to index
    %26 = memref.load %arg2[%24, %25] : memref<2x16xi32, #tpu.memory_space<smem>>
    %27 = arith.index_cast %26 : i32 to index
    %c0_8 = arith.constant 0 : index
    %28 = vector.load %arg3[%27, %c0_8] : memref<64x128xf32, #tpu.memory_space<vmem>>, vector<1x128xf32>
    %29 = arith.addi %0, %14 : i32
    %c2_i32 = arith.constant 2 : i32
    %30 = arith.addi %29, %c2_i32 : i32
    %31 = arith.index_cast %arg0 : i32 to index
    %32 = arith.index_cast %30 : i32 to index
    %33 = memref.load %arg2[%31, %32] : memref<2x16xi32, #tpu.memory_space<smem>>
    %34 = arith.index_cast %33 : i32 to index
    %c0_9 = arith.constant 0 : index
    %35 = vector.load %arg3[%34, %c0_9] : memref<64x128xf32, #tpu.memory_space<vmem>>, vector<1x128xf32>
    %36 = arith.addi %0, %14 : i32
    %c3_i32 = arith.constant 3 : i32
    %37 = arith.addi %36, %c3_i32 : i32
    %38 = arith.index_cast %arg0 : i32 to index
    %39 = arith.index_cast %37 : i32 to index
    %40 = memref.load %arg2[%38, %39] : memref<2x16xi32, #tpu.memory_space<smem>>
    %41 = arith.index_cast %40 : i32 to index
    %c0_10 = arith.constant 0 : index
    %42 = vector.load %arg3[%41, %c0_10] : memref<64x128xf32, #tpu.memory_space<vmem>>, vector<1x128xf32>
    %43 = arith.addi %0, %14 : i32
    %c4_i32 = arith.constant 4 : i32
    %44 = arith.addi %43, %c4_i32 : i32
    %45 = arith.index_cast %arg0 : i32 to index
    %46 = arith.index_cast %44 : i32 to index
    %47 = memref.load %arg2[%45, %46] : memref<2x16xi32, #tpu.memory_space<smem>>
    %48 = arith.index_cast %47 : i32 to index
    %c0_11 = arith.constant 0 : index
    %49 = vector.load %arg3[%48, %c0_11] : memref<64x128xf32, #tpu.memory_space<vmem>>, vector<1x128xf32>
    %50 = arith.addi %0, %14 : i32
    %c5_i32 = arith.constant 5 : i32
    %51 = arith.addi %50, %c5_i32 : i32
    %52 = arith.index_cast %arg0 : i32 to index
    %53 = arith.index_cast %51 : i32 to index
    %54 = memref.load %arg2[%52, %53] : memref<2x16xi32, #tpu.memory_space<smem>>
    %55 = arith.index_cast %54 : i32 to index
    %c0_12 = arith.constant 0 : index
    %56 = vector.load %arg3[%55, %c0_12] : memref<64x128xf32, #tpu.memory_space<vmem>>, vector<1x128xf32>
    %57 = arith.addi %0, %14 : i32
    %c6_i32 = arith.constant 6 : i32
    %58 = arith.addi %57, %c6_i32 : i32
    %59 = arith.index_cast %arg0 : i32 to index
    %60 = arith.index_cast %58 : i32 to index
    %61 = memref.load %arg2[%59, %60] : memref<2x16xi32, #tpu.memory_space<smem>>
    %62 = arith.index_cast %61 : i32 to index
    %c0_13 = arith.constant 0 : index
    %63 = vector.load %arg3[%62, %c0_13] : memref<64x128xf32, #tpu.memory_space<vmem>>, vector<1x128xf32>
    %64 = arith.addi %0, %14 : i32
    %c7_i32 = arith.constant 7 : i32
    %65 = arith.addi %64, %c7_i32 : i32
    %66 = arith.index_cast %arg0 : i32 to index
    %67 = arith.index_cast %65 : i32 to index
    %68 = memref.load %arg2[%66, %67] : memref<2x16xi32, #tpu.memory_space<smem>>
    %69 = arith.index_cast %68 : i32 to index
    %c0_14 = arith.constant 0 : index
    %70 = vector.load %arg3[%69, %c0_14] : memref<64x128xf32, #tpu.memory_space<vmem>>, vector<1x128xf32>
    %71 = tpu.concatenate %21, %28, %35, %42, %49, %56, %63, %70 in 0 : vector<1x128xf32>, vector<1x128xf32>, vector<1x128xf32>, vector<1x128xf32>, vector<1x128xf32>, vector<1x128xf32>, vector<1x128xf32>, vector<1x128xf32> -> vector<8x128xf32>
    %c0_15 = arith.constant 0 : index
    %72 = arith.index_cast %14 : i32 to index
    %c0_16 = arith.constant 0 : index
    %73 = vector.load %arg6[%c0_15, %72, %c0_16] : memref<1x16x1xi32, #tpu.memory_space<vmem>>, vector<1x8x1xi32>
    %74 = vector.shape_cast %73 : vector<1x8x1xi32> to vector<8x1xi32>
    %c1_i32_17 = arith.constant 1 : i32
    %75 = vector.broadcast %c1_i32_17 : i32 to vector<8x1xi32>
    %76 = arith.cmpi eq, %74, %75 : vector<8x1xi32>
    %77 = vector.shape_cast %76 : vector<8x1xi1> to vector<8x1xi1>
    %78 = vector.broadcast %77 : vector<8x1xi1> to vector<8x128xi1>
    %79 = arith.select %78, %12, %9 : vector<8x128xi1>, vector<8x128xf32>
    %80 = arith.index_cast %14 : i32 to index
    %c0_18 = arith.constant 0 : index
    %81 = vector.load %arg5[%80, %c0_18] : memref<16x128xf32, #tpu.memory_space<vmem>>, vector<8x128xf32>
    %82 = arith.addf %71, %79 : vector<8x128xf32>
    %83 = arith.addf %82, %81 : vector<8x128xf32>
    %cst = arith.constant dense<0.000000e+00> : vector<8xf32>
    %84 = vector.multi_reduction <add>, %83, %cst [1] : vector<8x128xf32> to vector<8xf32>
    %85 = vector.shape_cast %84 : vector<8xf32> to vector<8x1xf32>
    %86 = arith.mulf %83, %83 : vector<8x128xf32>
    %cst_19 = arith.constant dense<0.000000e+00> : vector<8xf32>
    %87 = vector.multi_reduction <add>, %86, %cst_19 [1] : vector<8x128xf32> to vector<8xf32>
    %88 = vector.shape_cast %87 : vector<8xf32> to vector<8x1xf32>
    %cst_20 = arith.constant 7.812500e-03 : f32
    %89 = vector.broadcast %cst_20 : f32 to vector<8x1xf32>
    %90 = arith.mulf %85, %89 : vector<8x1xf32>
    %cst_21 = arith.constant 7.812500e-03 : f32
    %91 = vector.broadcast %cst_21 : f32 to vector<8x1xf32>
    %92 = arith.mulf %88, %91 : vector<8x1xf32>
    %93 = arith.mulf %90, %90 : vector<8x1xf32>
    %94 = arith.subf %92, %93 : vector<8x1xf32>
    %cst_22 = arith.constant 9.99999996E-13 : f32
    %95 = vector.broadcast %cst_22 : f32 to vector<8x1xf32>
    %96 = arith.addf %94, %95 : vector<8x1xf32>
    %97 = math.rsqrt %96 : vector<8x1xf32>
    %98 = vector.broadcast %90 : vector<8x1xf32> to vector<8x128xf32>
    %99 = arith.subf %83, %98 : vector<8x128xf32>
    %100 = vector.broadcast %97 : vector<8x1xf32> to vector<8x128xf32>
    %101 = arith.mulf %99, %100 : vector<8x128xf32>
    %102 = arith.mulf %101, %3 : vector<8x128xf32>
    %103 = arith.addf %102, %6 : vector<8x128xf32>
    %c0_23 = arith.constant 0 : index
    %104 = arith.index_cast %14 : i32 to index
    %c0_24 = arith.constant 0 : index
    %105 = vector.load %arg9[%c0_23, %104, %c0_24] : memref<1x16x128xf32, #tpu.memory_space<vmem>>, vector<1x8x128xf32>
    %106 = vector.shape_cast %105 : vector<1x8x128xf32> to vector<8x128xf32>
    %107 = vector.shape_cast %103 : vector<8x128xf32> to vector<1x8x128xf32>
    tpu.vector_store %arg9[%c0_23, %104, %c0_24], %107 {strides = array<i32>} : memref<1x16x128xf32, #tpu.memory_space<vmem>>, vector<1x8x128xf32>,
    %c1_i32_25 = arith.constant 1 : i32
    %c8_i32_26 = arith.constant 8 : i32
    %108 = arith.muli %c1_i32_25, %c8_i32_26 : i32
    %109 = tpu.assume_multiple %108, 8 : i32
    %110 = arith.addi %0, %109 : i32
    %c0_i32_27 = arith.constant 0 : i32
    %111 = arith.addi %110, %c0_i32_27 : i32
    %112 = arith.index_cast %arg0 : i32 to index
    %113 = arith.index_cast %111 : i32 to index
    %114 = memref.load %arg2[%112, %113] : memref<2x16xi32, #tpu.memory_space<smem>>
    %115 = arith.index_cast %114 : i32 to index
    %c0_28 = arith.constant 0 : index
    %116 = vector.load %arg3[%115, %c0_28] : memref<64x128xf32, #tpu.memory_space<vmem>>, vector<1x128xf32>
    %117 = arith.addi %0, %109 : i32
    %c1_i32_29 = arith.constant 1 : i32
    %118 = arith.addi %117, %c1_i32_29 : i32
    %119 = arith.index_cast %arg0 : i32 to index
    %120 = arith.index_cast %118 : i32 to index
    %121 = memref.load %arg2[%119, %120] : memref<2x16xi32, #tpu.memory_space<smem>>
    %122 = arith.index_cast %121 : i32 to index
    %c0_30 = arith.constant 0 : index
    %123 = vector.load %arg3[%122, %c0_30] : memref<64x128xf32, #tpu.memory_space<vmem>>, vector<1x128xf32>
    %124 = arith.addi %0, %109 : i32
    %c2_i32_31 = arith.constant 2 : i32
    %125 = arith.addi %124, %c2_i32_31 : i32
    %126 = arith.index_cast %arg0 : i32 to index
    %127 = arith.index_cast %125 : i32 to index
    %128 = memref.load %arg2[%126, %127] : memref<2x16xi32, #tpu.memory_space<smem>>
    %129 = arith.index_cast %128 : i32 to index
    %c0_32 = arith.constant 0 : index
    %130 = vector.load %arg3[%129, %c0_32] : memref<64x128xf32, #tpu.memory_space<vmem>>, vector<1x128xf32>
    %131 = arith.addi %0, %109 : i32
    %c3_i32_33 = arith.constant 3 : i32
    %132 = arith.addi %131, %c3_i32_33 : i32
    %133 = arith.index_cast %arg0 : i32 to index
    %134 = arith.index_cast %132 : i32 to index
    %135 = memref.load %arg2[%133, %134] : memref<2x16xi32, #tpu.memory_space<smem>>
    %136 = arith.index_cast %135 : i32 to index
    %c0_34 = arith.constant 0 : index
    %137 = vector.load %arg3[%136, %c0_34] : memref<64x128xf32, #tpu.memory_space<vmem>>, vector<1x128xf32>
    %138 = arith.addi %0, %109 : i32
    %c4_i32_35 = arith.constant 4 : i32
    %139 = arith.addi %138, %c4_i32_35 : i32
    %140 = arith.index_cast %arg0 : i32 to index
    %141 = arith.index_cast %139 : i32 to index
    %142 = memref.load %arg2[%140, %141] : memref<2x16xi32, #tpu.memory_space<smem>>
    %143 = arith.index_cast %142 : i32 to index
    %c0_36 = arith.constant 0 : index
    %144 = vector.load %arg3[%143, %c0_36] : memref<64x128xf32, #tpu.memory_space<vmem>>, vector<1x128xf32>
    %145 = arith.addi %0, %109 : i32
    %c5_i32_37 = arith.constant 5 : i32
    %146 = arith.addi %145, %c5_i32_37 : i32
    %147 = arith.index_cast %arg0 : i32 to index
    %148 = arith.index_cast %146 : i32 to index
    %149 = memref.load %arg2[%147, %148] : memref<2x16xi32, #tpu.memory_space<smem>>
    %150 = arith.index_cast %149 : i32 to index
    %c0_38 = arith.constant 0 : index
    %151 = vector.load %arg3[%150, %c0_38] : memref<64x128xf32, #tpu.memory_space<vmem>>, vector<1x128xf32>
    %152 = arith.addi %0, %109 : i32
    %c6_i32_39 = arith.constant 6 : i32
    %153 = arith.addi %152, %c6_i32_39 : i32
    %154 = arith.index_cast %arg0 : i32 to index
    %155 = arith.index_cast %153 : i32 to index
    %156 = memref.load %arg2[%154, %155] : memref<2x16xi32, #tpu.memory_space<smem>>
    %157 = arith.index_cast %156 : i32 to index
    %c0_40 = arith.constant 0 : index
    %158 = vector.load %arg3[%157, %c0_40] : memref<64x128xf32, #tpu.memory_space<vmem>>, vector<1x128xf32>
    %159 = arith.addi %0, %109 : i32
    %c7_i32_41 = arith.constant 7 : i32
    %160 = arith.addi %159, %c7_i32_41 : i32
    %161 = arith.index_cast %arg0 : i32 to index
    %162 = arith.index_cast %160 : i32 to index
    %163 = memref.load %arg2[%161, %162] : memref<2x16xi32, #tpu.memory_space<smem>>
    %164 = arith.index_cast %163 : i32 to index
    %c0_42 = arith.constant 0 : index
    %165 = vector.load %arg3[%164, %c0_42] : memref<64x128xf32, #tpu.memory_space<vmem>>, vector<1x128xf32>
    %166 = tpu.concatenate %116, %123, %130, %137, %144, %151, %158, %165 in 0 : vector<1x128xf32>, vector<1x128xf32>, vector<1x128xf32>, vector<1x128xf32>, vector<1x128xf32>, vector<1x128xf32>, vector<1x128xf32>, vector<1x128xf32> -> vector<8x128xf32>
    %c0_43 = arith.constant 0 : index
    %167 = arith.index_cast %109 : i32 to index
    %c0_44 = arith.constant 0 : index
    %168 = vector.load %arg6[%c0_43, %167, %c0_44] : memref<1x16x1xi32, #tpu.memory_space<vmem>>, vector<1x8x1xi32>
    %169 = vector.shape_cast %168 : vector<1x8x1xi32> to vector<8x1xi32>
    %c1_i32_45 = arith.constant 1 : i32
    %170 = vector.broadcast %c1_i32_45 : i32 to vector<8x1xi32>
    %171 = arith.cmpi eq, %169, %170 : vector<8x1xi32>
    %172 = vector.shape_cast %171 : vector<8x1xi1> to vector<8x1xi1>
    %173 = vector.broadcast %172 : vector<8x1xi1> to vector<8x128xi1>
    %174 = arith.select %173, %12, %9 : vector<8x128xi1>, vector<8x128xf32>
    %175 = arith.index_cast %109 : i32 to index
    %c0_46 = arith.constant 0 : index
    %176 = vector.load %arg5[%175, %c0_46] : memref<16x128xf32, #tpu.memory_space<vmem>>, vector<8x128xf32>
    %177 = arith.addf %166, %174 : vector<8x128xf32>
    %178 = arith.addf %177, %176 : vector<8x128xf32>
    %cst_47 = arith.constant dense<0.000000e+00> : vector<8xf32>
    %179 = vector.multi_reduction <add>, %178, %cst_47 [1] : vector<8x128xf32> to vector<8xf32>
    %180 = vector.shape_cast %179 : vector<8xf32> to vector<8x1xf32>
    %181 = arith.mulf %178, %178 : vector<8x128xf32>
    %cst_48 = arith.constant dense<0.000000e+00> : vector<8xf32>
    %182 = vector.multi_reduction <add>, %181, %cst_48 [1] : vector<8x128xf32> to vector<8xf32>
    %183 = vector.shape_cast %182 : vector<8xf32> to vector<8x1xf32>
    %cst_49 = arith.constant 7.812500e-03 : f32
    %184 = vector.broadcast %cst_49 : f32 to vector<8x1xf32>
    %185 = arith.mulf %180, %184 : vector<8x1xf32>
    %cst_50 = arith.constant 7.812500e-03 : f32
    %186 = vector.broadcast %cst_50 : f32 to vector<8x1xf32>
    %187 = arith.mulf %183, %186 : vector<8x1xf32>
    %188 = arith.mulf %185, %185 : vector<8x1xf32>
    %189 = arith.subf %187, %188 : vector<8x1xf32>
    %cst_51 = arith.constant 9.99999996E-13 : f32
    %190 = vector.broadcast %cst_51 : f32 to vector<8x1xf32>
    %191 = arith.addf %189, %190 : vector<8x1xf32>
    %192 = math.rsqrt %191 : vector<8x1xf32>
    %193 = vector.broadcast %185 : vector<8x1xf32> to vector<8x128xf32>
    %194 = arith.subf %178, %193 : vector<8x128xf32>
    %195 = vector.broadcast %192 : vector<8x1xf32> to vector<8x128xf32>
    %196 = arith.mulf %194, %195 : vector<8x128xf32>
    %197 = arith.mulf %196, %3 : vector<8x128xf32>
    %198 = arith.addf %197, %6 : vector<8x128xf32>
    %c0_52 = arith.constant 0 : index
    %199 = arith.index_cast %109 : i32 to index
    %c0_53 = arith.constant 0 : index
    %200 = vector.load %arg9[%c0_52, %199, %c0_53] : memref<1x16x128xf32, #tpu.memory_space<vmem>>, vector<1x8x128xf32>
    %201 = vector.shape_cast %200 : vector<1x8x128xf32> to vector<8x128xf32>
    %202 = vector.shape_cast %198 : vector<8x128xf32> to vector<1x8x128xf32>
    tpu.vector_store %arg9[%c0_52, %199, %c0_53], %202 {strides = array<i32>} : memref<1x16x128xf32, #tpu.memory_space<vmem>>, vector<1x8x128xf32>,
    %c2_i32_54 = arith.constant 2 : i32
    return
  }
  func.func @transform_0(%arg0: i32, %arg1: i32, %arg2: memref<2x16xi32, #tpu.memory_space<smem>>) -> (i32, i32) {
    %c0_i32 = arith.constant 0 : i32
    %c0_i32_0 = arith.constant 0 : i32
    %c0_i32_1 = arith.constant 0 : i32
    return %c0_i32, %c0_i32_0 : i32, i32
  }
  func.func @transform_1(%arg0: i32, %arg1: i32, %arg2: memref<2x16xi32, #tpu.memory_space<smem>>) -> (i32, i32) {
    %c0_i32 = arith.constant 0 : i32
    %c0_i32_0 = arith.constant 0 : i32
    %c0_i32_1 = arith.constant 0 : i32
    return %c0_i32, %c0_i32_0 : i32, i32
  }
  func.func @transform_2(%arg0: i32, %arg1: i32, %arg2: memref<2x16xi32, #tpu.memory_space<smem>>) -> (i32, i32) {
    %c0_i32 = arith.constant 0 : i32
    %c0_i32_0 = arith.constant 0 : i32
    return %arg1, %c0_i32 : i32, i32
  }
  func.func @transform_3(%arg0: i32, %arg1: i32, %arg2: memref<2x16xi32, #tpu.memory_space<smem>>) -> (i32, i32, i32) {
    %c0_i32 = arith.constant 0 : i32
    %c0_i32_0 = arith.constant 0 : i32
    return %arg0, %arg1, %c0_i32 : i32, i32, i32
  }
  func.func @transform_4(%arg0: i32, %arg1: i32, %arg2: memref<2x16xi32, #tpu.memory_space<smem>>) -> (i32, i32) {
    %c0_i32 = arith.constant 0 : i32
    %c0_i32_0 = arith.constant 0 : i32
    %c0_i32_1 = arith.constant 0 : i32
    return %c0_i32, %c0_i32_0 : i32, i32
  }
  func.func @transform_5(%arg0: i32, %arg1: i32, %arg2: memref<2x16xi32, #tpu.memory_space<smem>>) -> (i32, i32) {
    %c0_i32 = arith.constant 0 : i32
    %c0_i32_0 = arith.constant 0 : i32
    %c0_i32_1 = arith.constant 0 : i32
    return %c0_i32, %c0_i32_0 : i32, i32
  }
  func.func @transform_6(%arg0: i32, %arg1: i32, %arg2: memref<2x16xi32, #tpu.memory_space<smem>>) -> (i32, i32, i32) {
    %c0_i32 = arith.constant 0 : i32
    %c0_i32_0 = arith.constant 0 : i32
    return %arg0, %arg1, %c0_i32 : i32, i32, i32
  }
}

</mosaic_0001>

<llo_original>
// kernel: bert_embeddings.1
$region0: #{bert_embeddings.1}
  #allocation0 [shape = 'u32[]', space=smem, size = 0x4, offset = 0x4, fixed_abs, tag = 'smem constant byte address 0x4 - core index']
  #allocation1 [shape = 'u32[144,128]{1,0:T(1,128)}', space=vmem, size = 0x12000, scoped, tag = 'internal scratch']
  #allocation2 [shape = 's32[1]{0}', space=sflag, size = 0x4, scoped, tag = 'scoped memory for bert_embeddings.1']
  #allocation3 [shape = 'u8[1024]{0}', space=smem, size = 0x400, scoped, tag = 'prefetched SMEM operand 0']
  %s0 = inlined_call_operand.vmem [shape: s32[2,16], index: 0, kind: input, shape index: {}]
  %s1 = inlined_call_operand.hbm [shape: f32[64,128], index: 1, kind: input, shape index: {}]
  %s2 = inlined_call_operand.vmem [shape: f32[2,128], index: 2, kind: input, shape index: {}]
  %s3 = inlined_call_operand.vmem [shape: f32[16,128], index: 3, kind: input, shape index: {}]
  %s4 = inlined_call_operand.vmem [shape: s32[2,16,1], index: 4, kind: input, shape index: {}]
  %s5 = inlined_call_operand.vmem [shape: f32[1,128], index: 5, kind: input, shape index: {}]
  %s6 = inlined_call_operand.vmem [shape: f32[1,128], index: 6, kind: input, shape index: {}]
  %s7 = inlined_call_operand.hbm [shape: f32[2,16,128], index: 7, kind: output, shape index: {}]
  %s8 = sld [smem:[#allocation0]]
  $region61: #{bert_embeddings.1} parent=0
    _
  %s10 = ssub.s32 1, %s8
  %s11 = scalar_select 0, %s10, %s8
  %s12 = sshll.u32 %s0, 4
  %s13 = int_to_ptr.vmem [resolvable:$true] %s12
  %15 = dma.vmem_to_smem %s13, 32, [#allocation3], [#allocation2]
  %16 = dma.done [#allocation2], 32
  %17 = sfence
  $region1: #{bert_embeddings.1} parent=0
    #allocation4 [shape = 'u8[32768]{0}', space=vmem, size = 0x8000, scoped, tag = 'input window, operand 1, single buffered']
    #allocation5 [shape = 's32[2]{0}', space=sflag, size = 0x8, scoped, tag = 'scoped memory for bert_embeddings.1']
    #allocation6 [shape = 's32[2]{0}', space=sflag, size = 0x8, scoped, tag = 'scoped memory for bert_embeddings.1']
    #allocation7 [shape = 'u8[16384]{0}', space=vmem, size = 0x4000, scoped, tag = 'output window, operand 0']
    %18 = vsyncpa [#allocation5], 0
    %19 = vsyncpa [#allocation6], 0
    %s20 = scalar_lea.sflag [#allocation6], 1
    %21 = vsyncpa %s20, 0
    loop: start=0, step=1, limit=4
    $region2: #{bert_embeddings.1} parent=1 // loop_pre_header
      _
    $region3: #{bert_embeddings.1} parent=1 // loop_header
      %s23 = sphi 0, %s27
      %p24 = scmp.ge.s32.totalorder %s23, 4
      %s30 = sphi 0, %s42
      %s31 = sphi 0, %s38
      %s32 = sphi 0, %s30
      %s33 = sphi 0, %s31
      %s34 = sphi 0, %s32
      %s35 = sphi 0, %s33
      %s43 = sphi 0, %s43
      %s45 = sphi 0, %s43
      %s46 = sphi 0, %s45
      %s60 = sphi 0, %s46
      %s64 = sphi 0, %s64
      %s66 = sphi 0, %s64
      %s67 = sphi 0, %s66
      %s81 = sphi 0, %s67
      %s87 = sphi 0, %s89
      %s90 = sphi 0, %s87
      %s91 = sphi 0, %s90
      %s107 = sphi 0, %s91
      %s115 = sphi 0, %s117
      %s118 = sphi 0, %s115
      %s119 = sphi 0, %s118
      %s135 = sphi 0, %s119
      %s139 = sphi 0, %s139
      %s141 = sphi 0, %s139
      %s142 = sphi 0, %s141
      %s156 = sphi 0, %s142
      %s160 = sphi 0, %s160
      %s162 = sphi 0, %s160
      %s163 = sphi 0, %s162
      %s177 = sphi 0, %s163
      %s185 = sphi 0, %s187
      %s188 = sphi 0, %s185
      %s189 = sphi 0, %s188
      %s205 = sphi 0, %s189
    $region4: #{bert_embeddings.1} parent=1 // loop_header_branch
      %26 = sbr.rel (%p24) target = $region8
    $region5: #{bert_embeddings.1} parent=1 // loop_body
      %s28 = ssub.s32 %s23, 1
      %s29 = ssub.s32 %s23, 2
      %s36 = sadd.s32 1, %s31
      %p37 = scmp.ge.s32.totalorder %s36, 1
      %s38 = scalar_select %p37, 0, %s36
      %s39 = sadd.s32 1, %s30
      %s40 = scalar_select %p37, %s39, %s30
      %p41 = scmp.ge.s32.totalorder %s40, 2
      %s42 = scalar_select %p41, 0, %s40
      %s44 = sadd.s32 %s43, 1
      %p47 = scmp.eq.s32.totalorder %s23, 1
      %p48 = scmp.ne.s32.totalorder %s43, %s45
      %p49 = scmp.eq.s32.totalorder %s23, 0
      %p50 = por %p48, %p49
      %p51 = scmp.ne.s32.totalorder %s43, %s45
      %p52 = scmp.eq.s32.totalorder %s28, 1
      %p53 = por %p51, %p52
      %p54 = scmp.ne.s32.totalorder %s45, %s46
      %p55 = scmp.eq.s32.totalorder %s28, 0
      %p56 = por %p54, %p55
      %p57 = scmp.ne.s32.totalorder %s45, %s46
      %p58 = scmp.eq.s32.totalorder %s29, 1
      %p59 = por %p57, %p58
      %p61 = scmp.ne.s32.totalorder %s46, %s60
      %p62 = scmp.eq.s32.totalorder %s29, 0
      %p63 = por %p61, %p62
      %s65 = sadd.s32 %s64, 1
      %p68 = scmp.eq.s32.totalorder %s23, 1
      %p69 = scmp.ne.s32.totalorder %s64, %s66
      %p70 = scmp.eq.s32.totalorder %s23, 0
      %p71 = por %p69, %p70
      %p72 = scmp.ne.s32.totalorder %s64, %s66
      %p73 = scmp.eq.s32.totalorder %s28, 1
      %p74 = por %p72, %p73
      %p75 = scmp.ne.s32.totalorder %s66, %s67
      %p76 = scmp.eq.s32.totalorder %s28, 0
      %p77 = por %p75, %p76
      %p78 = scmp.ne.s32.totalorder %s66, %s67
      %p79 = scmp.eq.s32.totalorder %s29, 1
      %p80 = por %p78, %p79
      %p82 = scmp.ne.s32.totalorder %s67, %s81
      %p83 = scmp.eq.s32.totalorder %s29, 0
      %p84 = por %p82, %p83
      %s85 = ssub.s32 %s31, %s38
      %p86 = scmp.eq.s32.totalorder %s85, 0
      %s88 = sadd.s32 %s87, 1
      %s89 = scalar_select %p86, %s87, %s88
      %p92 = pneg %p86
      %p93 = scmp.eq.s32.totalorder %s23, 1
      %p94 = por %p92, %p93
      %p95 = scmp.ne.s32.totalorder %s87, %s90
      %p96 = scmp.eq.s32.totalorder %s23, 0
      %p97 = por %p95, %p96
      %p98 = scmp.ne.s32.totalorder %s87, %s90
      %p99 = scmp.eq.s32.totalorder %s28, 1
      %p100 = por %p98, %p99
      %p101 = scmp.ne.s32.totalorder %s90, %s91
      %p102 = scmp.eq.s32.totalorder %s28, 0
      %p103 = por %p101, %p102
      %p104 = scmp.ne.s32.totalorder %s90, %s91
      %p105 = scmp.eq.s32.totalorder %s29, 1
      %p106 = por %p104, %p105
      %p108 = scmp.ne.s32.totalorder %s91, %s107
      %p109 = scmp.eq.s32.totalorder %s29, 0
      %p110 = por %p108, %p109
      %s111 = ssub.s32 %s30, %s42
      %s112 = ssub.s32 %s31, %s38
      %s113 = sor.u32 %s111, %s112
      %p114 = scmp.eq.s32.totalorder %s113, 0
      %s116 = sadd.s32 %s115, 1
      %s117 = scalar_select %p114, %s115, %s116
      %p120 = pneg %p114
      %p121 = scmp.eq.s32.totalorder %s23, 1
      %p122 = por %p120, %p121
      %p123 = scmp.ne.s32.totalorder %s115, %s118
      %p124 = scmp.eq.s32.totalorder %s23, 0
      %p125 = por %p123, %p124
      %p126 = scmp.ne.s32.totalorder %s115, %s118
      %p127 = scmp.eq.s32.totalorder %s28, 1
      %p128 = por %p126, %p127
      %p129 = scmp.ne.s32.totalorder %s118, %s119
      %p130 = scmp.eq.s32.totalorder %s28, 0
      %p131 = por %p129, %p130
      %p132 = scmp.ne.s32.totalorder %s118, %s119
      %p133 = scmp.eq.s32.totalorder %s29, 1
      %p134 = por %p132, %p133
      %p136 = scmp.ne.s32.totalorder %s119, %s135
      %p137 = scmp.eq.s32.totalorder %s29, 0
      %p138 = por %p136, %p137
      %s140 = sadd.s32 %s139, 1
      %p143 = scmp.eq.s32.totalorder %s23, 1
      %p144 = scmp.ne.s32.totalorder %s139, %s141
      %p145 = scmp.eq.s32.totalorder %s23, 0
      %p146 = por %p144, %p145
      %p147 = scmp.ne.s32.totalorder %s139, %s141
      %p148 = scmp.eq.s32.totalorder %s28, 1
      %p149 = por %p147, %p148
      %p150 = scmp.ne.s32.totalorder %s141, %s142
      %p151 = scmp.eq.s32.totalorder %s28, 0
      %p152 = por %p150, %p151
      %p153 = scmp.ne.s32.totalorder %s141, %s142
      %p154 = scmp.eq.s32.totalorder %s29, 1
      %p155 = por %p153, %p154
      %p157 = scmp.ne.s32.totalorder %s142, %s156
      %p158 = scmp.eq.s32.totalorder %s29, 0
      %p159 = por %p157, %p158
      %s161 = sadd.s32 %s160, 1
      %p164 = scmp.eq.s32.totalorder %s23, 1
      %p165 = scmp.ne.s32.totalorder %s160, %s162
      %p166 = scmp.eq.s32.totalorder %s23, 0
      %p167 = por %p165, %p166
      %p168 = scmp.ne.s32.totalorder %s160, %s162
      %p169 = scmp.eq.s32.totalorder %s28, 1
      %p170 = por %p168, %p169
      %p171 = scmp.ne.s32.totalorder %s162, %s163
      %p172 = scmp.eq.s32.totalorder %s28, 0
      %p173 = por %p171, %p172
      %p174 = scmp.ne.s32.totalorder %s162, %s163
      %p175 = scmp.eq.s32.totalorder %s29, 1
      %p176 = por %p174, %p175
      %p178 = scmp.ne.s32.totalorder %s163, %s177
      %p179 = scmp.eq.s32.totalorder %s29, 0
      %p180 = por %p178, %p179
      %s181 = ssub.s32 %s30, %s42
      %s182 = ssub.s32 %s31, %s38
      %s183 = sor.u32 %s181, %s182
      %p184 = scmp.eq.s32.totalorder %s183, 0
      %s186 = sadd.s32 %s185, 1
      %s187 = scalar_select %p184, %s185, %s186
      %p190 = pneg %p184
      %p191 = scmp.eq.s32.totalorder %s23, 1
      %p192 = por %p190, %p191
      %p193 = scmp.ne.s32.totalorder %s185, %s188
      %p194 = scmp.eq.s32.totalorder %s23, 0
      %p195 = por %p193, %p194
      %p196 = scmp.ne.s32.totalorder %s185, %s188
      %p197 = scmp.eq.s32.totalorder %s28, 1
      %p198 = por %p196, %p197
      %p199 = scmp.ne.s32.totalorder %s188, %s189
      %p200 = scmp.eq.s32.totalorder %s28, 0
      %p201 = por %p199, %p200
      %p202 = scmp.ne.s32.totalorder %s188, %s189
      %p203 = scmp.eq.s32.totalorder %s29, 1
      %p204 = por %p202, %p203
      %p206 = scmp.ne.s32.totalorder %s189, %s205
      %p207 = scmp.eq.s32.totalorder %s29, 0
      %p208 = por %p206, %p207
      %p209 = scmp.le.s32.totalorder 1, %s23
      %p210 = scmp.lt.s32.totalorder %s23, 3
      %p211 = pnand %p209, %p210
      %p212 = pneg %p211
      // Predicated region
      $region9: #{bert_embeddings.1} parent=5 // pred_check
        _
      $region10: #{bert_embeddings.1} parent=5 // pred_check_branch
        %214 = sbr.rel (%p211) target = $region12
      $region11: #{bert_embeddings.1} parent=5 // pred_region
        %s215 = ssub.s32 %s23, 1
        // Predicated region
        $region13: #{bert_embeddings.1} parent=11 // pred_check
          %p216 = pneg %p56
        $region14: #{bert_embeddings.1} parent=11 // pred_check_branch
          %218 = sbr.rel (%p216) target = $region16
        $region15: #{bert_embeddings.1} parent=11 // pred_region
          %s220 = ssub.s32 1024, 1024
          %221 = vsyncadd [#allocation5], %s220
          %s222 = sshll.u32 [#allocation4], 4
          %s223 = int_to_ptr.vmem [resolvable:$true] %s222
          %228 = dma.hbm_to_vmem [thread:$0]  %s1, 1024, %s223, [#allocation5], 128, 128, 8
        $region16: #{bert_embeddings.1} parent=11 // pred_fallthru
          _
        // Predicated region
        $region17: #{bert_embeddings.1} parent=11 // pred_check
          %p229 = pneg %p77
        $region18: #{bert_embeddings.1} parent=11 // pred_check_branch
          %231 = sbr.rel (%p229) target = $region20
        $region19: #{bert_embeddings.1} parent=11 // pred_region
          _
        $region20: #{bert_embeddings.1} parent=11 // pred_fallthru
          _
        // Predicated region
        $region21: #{bert_embeddings.1} parent=11 // pred_check
          %p232 = pneg %p103
        $region22: #{bert_embeddings.1} parent=11 // pred_check_branch
          %234 = sbr.rel (%p232) target = $region24
        $region23: #{bert_embeddings.1} parent=11 // pred_region
          %s235 = smul.u32 2, %s33
          %p236 = scmp.lt.s32.totalorder %s235, 1
          %s237 = scalar_select %p236, %s235, 1
          %s238 = smul.addr %s237, 8
          %s239 = scalar_lea.vmem %s3, %s238
          %s240 = smul.u32 2, %s33
        $region24: #{bert_embeddings.1} parent=11 // pred_fallthru
          _
        // Predicated region
        $region25: #{bert_embeddings.1} parent=11 // pred_check
          %p241 = pneg %p152
        $region26: #{bert_embeddings.1} parent=11 // pred_check_branch
          %243 = sbr.rel (%p241) target = $region28
        $region27: #{bert_embeddings.1} parent=11 // pred_region
          _
        $region28: #{bert_embeddings.1} parent=11 // pred_fallthru
          _
        // Predicated region
        $region29: #{bert_embeddings.1} parent=11 // pred_check
          %p244 = pneg %p173
        $region30: #{bert_embeddings.1} parent=11 // pred_check_branch
          %246 = sbr.rel (%p244) target = $region32
        $region31: #{bert_embeddings.1} parent=11 // pred_region
          _
        $region32: #{bert_embeddings.1} parent=11 // pred_fallthru
          _
      $region12: #{bert_embeddings.1} parent=5 // pred_fallthru
        _
      %p247 = scmp.lt.s32.totalorder %s23, 2
      // Predicated region
      $region33: #{bert_embeddings.1} parent=5 // pred_check
        %p248 = pneg %p247
      $region34: #{bert_embeddings.1} parent=5 // pred_check_branch
        %250 = sbr.rel (%p248) target = $region36
      $region35: #{bert_embeddings.1} parent=5 // pred_region
        // Predicated region
        $region37: #{bert_embeddings.1} parent=35 // pred_check
          %p251 = pneg %p125
        $region38: #{bert_embeddings.1} parent=35 // pred_check_branch
          %253 = sbr.rel (%p251) target = $region40
        $region39: #{bert_embeddings.1} parent=35 // pred_region
          %s254 = smul.u32 2, %s31
          %p255 = scmp.lt.s32.totalorder %s30, 1
          %s256 = scalar_select %p255, %s30, 1
          %p257 = scmp.lt.s32.totalorder %s254, 1
          %s258 = scalar_select %p257, %s254, 1
          %s259 = smul.addr %s256, 2
          %s260 = sadd.s32 %s258, %s259
          %s261 = smul.addr %s260, 8
          %s262 = scalar_lea.vmem %s4, %s261
          %s263 = smul.u32 2, %s31
        $region40: #{bert_embeddings.1} parent=35 // pred_fallthru
          _
      $region36: #{bert_embeddings.1} parent=5 // pred_fallthru
        _
      %p264 = scmp.le.s32.totalorder 1, %s23
      %p265 = scmp.lt.s32.totalorder %s23, 3
      %p266 = pnand %p264, %p265
      %p267 = pneg %p266
      // Predicated region
      $region41: #{bert_embeddings.1} parent=5 // pred_check
        _
      $region42: #{bert_embeddings.1} parent=5 // pred_check_branch
        %269 = sbr.rel (%p266) target = $region44
      $region43: #{bert_embeddings.1} parent=5 // pred_region
        %s270 = ssub.s32 %s23, 1
        // Predicated region
        $region45: #{bert_embeddings.1} parent=43 // pred_check
          %p271 = pneg %p56
        $region46: #{bert_embeddings.1} parent=43 // pred_check_branch
          %273 = sbr.rel (%p271) target = $region48
        $region47: #{bert_embeddings.1} parent=43 // pred_region
          %274 = dma.done [#allocation5], 1024
        $region48: #{bert_embeddings.1} parent=43 // pred_fallthru
          _
        %p275 = pneg %p56
        %p276 = pneg %p53
        %p277 = pneg %p77
        %p278 = pneg %p74
        %s279 = smul.u32 2, %s33
        %p280 = scmp.lt.s32.totalorder %s279, 1
        %s281 = scalar_select %p280, %s279, 1
        %s282 = smul.addr %s281, 8
        %s283 = scalar_lea.vmem %s3, %s282
        %p284 = pneg %p103
        %p285 = pneg %p100
        %s286 = smul.u32 2, %s33
        %p287 = scmp.lt.s32.totalorder %s32, 1
        %s288 = scalar_select %p287, %s32, 1
        %p289 = scmp.lt.s32.totalorder %s286, 1
        %s290 = scalar_select %p289, %s286, 1
        %s291 = smul.addr %s288, 2
        %s292 = sadd.s32 %s290, %s291
        %s293 = smul.addr %s292, 8
        %s294 = scalar_lea.vmem %s4, %s293
        %p295 = pneg %p131
        %p296 = pneg %p128
        %p297 = pneg %p152
        %p298 = pneg %p149
        %p299 = pneg %p173
        %p300 = pneg %p170
        %p301 = pneg %p201
        %p302 = pneg %p198
        %s303 = sand.u32 %s188, 1
        %s304 = scalar_lea.sflag [#allocation6], %s303
        %s305 = sand.u32 %s188, 1
        %s306 = smul.addr %s305, 16
        %s307 = scalar_lea.vmem [#allocation7], %s306
        %s308 = smul.u32 2, %s33
        %p309 = scmp.lt.s32.totalorder %s308, 1
        %s310 = scalar_select %p309, %s308, 1
        %s311 = smul.addr %s310, 8
        %s312 = scalar_lea.vmem %s3, %s311
        %s313 = smul.u32 2, %s33
        %s314 = smul.u32 2, %s33
        %p315 = scmp.lt.s32.totalorder %s32, 1
        %s316 = scalar_select %p315, %s32, 1
        %p317 = scmp.lt.s32.totalorder %s314, 1
        %s318 = scalar_select %p317, %s314, 1
        %s319 = smul.addr %s316, 2
        %s320 = sadd.s32 %s318, %s319
        %s321 = smul.addr %s320, 8
        %s322 = scalar_lea.vmem %s4, %s321
        %s323 = smul.u32 2, %s33
        %s324 = smul.u32 2, %s33
        %s325 = smul.u32 %s33, 16
        %v326 = vld [vmem:[%s5] sm:$0x1]
        %v328 = vlaneseq
        %v329 = vshrl.u32 %v328, 7
        %v330 = vsub.s32 0, %v329
        %v331 = vrot.slane %v326, %v330
        %v333 = vld [vmem:[%s6] sm:$0x1]
        %v335 = vlaneseq
        %v336 = vshrl.u32 %v335, 7
        %v337 = vsub.s32 0, %v336
        %v338 = vrot.slane %v333, %v337
        %v340 = vld [vmem:[%s2] sm:$0x1]
        %v341 = vlaneseq
        %v342 = vshrl.u32 %v341, 7
        %v343 = vsub.s32 0, %v342
        %v344 = vrot.slane %v340, %v343
        %v345 = vld [vmem:[%s2 + $0x1] sm:$0x1]
        %v346 = vlaneseq
        %v347 = vshrl.u32 %v346, 7
        %v348 = vsub.s32 0, %v347
        %v349 = vrot.slane %v345, %v348
        %s350 = sadd.s32 %s325, 0
        %s351 = sshra.s32 %s350, 7
        %s352 = sand.u32 %s350, 127
        %s353 = sadd.s32 %s351, %s32
        %s354 = smul.u32 %s353, 128
        %s355 = sshra.s32 %s350, 7
        %s356 = sand.u32 %s350, 127
        %s357 = sadd.s32 %s354, %s356
        %s358 = sld [smem:[#allocation3 + %s357]]
        %s359 = scalar_lea.vmem [#allocation4], %s358
        %v360 = vld [vmem:[%s359] sm:$0x1]
        %s361 = sadd.s32 %s350, 1
        %s362 = sshra.s32 %s361, 7
        %s363 = sand.u32 %s361, 127
        %s364 = sadd.s32 %s362, %s32
        %s365 = smul.u32 %s364, 128
        %s366 = sshra.s32 %s361, 7
        %s367 = sand.u32 %s361, 127
        %s368 = sadd.s32 %s365, %s367
        %s369 = sld [smem:[#allocation3 + %s368]]
        %s370 = scalar_lea.vmem [#allocation4], %s369
        %v371 = vld [vmem:[%s370] sm:$0x1]
        %s372 = sadd.s32 %s350, 2
        %s373 = sshra.s32 %s372, 7
        %s374 = sand.u32 %s372, 127
        %s375 = sadd.s32 %s373, %s32
        %s376 = smul.u32 %s375, 128
        %s377 = sshra.s32 %s372, 7
        %s378 = sand.u32 %s372, 127
        %s379 = sadd.s32 %s376, %s378
        %s380 = sld [smem:[#allocation3 + %s379]]
        %s381 = scalar_lea.vmem [#allocation4], %s380
        %v382 = vld [vmem:[%s381] sm:$0x1]
        %s383 = sadd.s32 %s350, 3
        %s384 = sshra.s32 %s383, 7
        %s385 = sand.u32 %s383, 127
        %s386 = sadd.s32 %s384, %s32
        %s387 = smul.u32 %s386, 128
        %s388 = sshra.s32 %s383, 7
        %s389 = sand.u32 %s383, 127
        %s390 = sadd.s32 %s387, %s389
        %s391 = sld [smem:[#allocation3 + %s390]]
        %s392 = scalar_lea.vmem [#allocation4], %s391
        %v393 = vld [vmem:[%s392] sm:$0x1]
        %s394 = sadd.s32 %s350, 4
        %s395 = sshra.s32 %s394, 7
        %s396 = sand.u32 %s394, 127
        %s397 = sadd.s32 %s395, %s32
        %s398 = smul.u32 %s397, 128
        %s399 = sshra.s32 %s394, 7
        %s400 = sand.u32 %s394, 127
        %s401 = sadd.s32 %s398, %s400
        %s402 = sld [smem:[#allocation3 + %s401]]
        %s403 = scalar_lea.vmem [#allocation4], %s402
        %v404 = vld [vmem:[%s403] sm:$0x1]
        %s405 = sadd.s32 %s350, 5
        %s406 = sshra.s32 %s405, 7
        %s407 = sand.u32 %s405, 127
        %s408 = sadd.s32 %s406, %s32
        %s409 = smul.u32 %s408, 128
        %s410 = sshra.s32 %s405, 7
        %s411 = sand.u32 %s405, 127
        %s412 = sadd.s32 %s409, %s411
        %s413 = sld [smem:[#allocation3 + %s412]]
        %s414 = scalar_lea.vmem [#allocation4], %s413
        %v415 = vld [vmem:[%s414] sm:$0x1]
        %s416 = sadd.s32 %s350, 6
        %s417 = sshra.s32 %s416, 7
        %s418 = sand.u32 %s416, 127
        %s419 = sadd.s32 %s417, %s32
        %s420 = smul.u32 %s419, 128
        %s421 = sshra.s32 %s416, 7
        %s422 = sand.u32 %s416, 127
        %s423 = sadd.s32 %s420, %s422
        %s424 = sld [smem:[#allocation3 + %s423]]
        %s425 = scalar_lea.vmem [#allocation4], %s424
        %v426 = vld [vmem:[%s425] sm:$0x1]
        %s427 = sadd.s32 %s350, 7
        %s428 = sshra.s32 %s427, 7
        %s429 = sand.u32 %s427, 127
        %s430 = sadd.s32 %s428, %s32
        %s431 = smul.u32 %s430, 128
        %s432 = sshra.s32 %s427, 7
        %s433 = sand.u32 %s427, 127
        %s434 = sadd.s32 %s431, %s433
        %s435 = sld [smem:[#allocation3 + %s434]]
        %s436 = scalar_lea.vmem [#allocation4], %s435
        %v437 = vld [vmem:[%s436] sm:$0x1]
        %v439 = vrot.slane %v371, 7
        %v442 = vrot.slane %v382, 6
        %v445 = vrot.slane %v393, 5
        %v448 = vrot.slane %v404, 4
        %v451 = vrot.slane %v415, 3
        %v454 = vrot.slane %v426, 2
        %v457 = vrot.slane %v437, 1
        %vm459 = vcmask 1040384
        %v460 = vsel %vm459, %v360, %v439
        %vm461 = vcmask 1041408
        %v462 = vsel %vm461, %v460, %v442
        %vm463 = vcmask 1042432
        %v464 = vsel %vm463, %v462, %v445
        %vm465 = vcmask 1043456
        %v466 = vsel %vm465, %v464, %v448
        %vm467 = vcmask 1044480
        %v468 = vsel %vm467, %v466, %v451
        %vm469 = vcmask 1045504
        %v470 = vsel %vm469, %v468, %v454
        %vm471 = vcmask 1046528
        %v472 = vsel %vm471, %v470, %v457
        %v473 = vld [vmem:[%s322] sm:$0xff]
        %vm474 = vcmp.eq.s32.totalorder %v473, 1
        %v475 = vsel %vm474, 1, 0
        %476 = vset.pattern.permute.xlu0 0
        %477 = vperm.xlu0 %476, %v475
        %v478 = vpop.permute.xlu0 %477
        %vm479 = vcmp.eq.s32.totalorder %v478, 1
        %v480 = vsel %vm479, %v349, %v344
        %v481 = vld [vmem:[%s312] sm:$0xff]
        %v482 = vadd.f32 %v472, %v480
        %v483 = vadd.f32 %v482, %v481
        %484 = vadd.xlane.f32.xlu0 %v483
        %v485 = vpop.xlane.xlu0 %484
        %v486 = vmul.f32 %v483, %v483
        %487 = vadd.xlane.f32.xlu0 %v486
        %v488 = vpop.xlane.xlu0 %487
        %v489 = vmul.f32 %v485, 0.0078125
        %v490 = vmul.f32 %v488, 0.0078125
        %v491 = vmul.f32 %v489, %v489
        %v492 = vsub.f32 %v490, %v491
        %v493 = vadd.f32 %v492, 1e-12
        %v494 = vrsqrt.pop %v493
        %v495 = vsub.f32 %v483, %v489
        %v496 = vmul.f32 %v495, %v494
        %v497 = vmul.f32 %v496, %v331
        %v498 = vadd.f32 %v497, %v338
        %499 = vst [vmem:[%s307] sm:$0xff] %v498
        %s500 = sadd.s32 %s325, 8
        %s501 = sshra.s32 %s500, 7
        %s502 = sand.u32 %s500, 127
        %s503 = sadd.s32 %s501, %s32
        %s504 = smul.u32 %s503, 128
        %s505 = sshra.s32 %s500, 7
        %s506 = sand.u32 %s500, 127
        %s507 = sadd.s32 %s504, %s506
        %s508 = sld [smem:[#allocation3 + %s507]]
        %s509 = scalar_lea.vmem [#allocation4], %s508
        %v510 = vld [vmem:[%s509] sm:$0x1]
        %s511 = sadd.s32 %s500, 1
        %s512 = sshra.s32 %s511, 7
        %s513 = sand.u32 %s511, 127
        %s514 = sadd.s32 %s512, %s32
        %s515 = smul.u32 %s514, 128
        %s516 = sshra.s32 %s511, 7
        %s517 = sand.u32 %s511, 127
        %s518 = sadd.s32 %s515, %s517
        %s519 = sld [smem:[#allocation3 + %s518]]
        %s520 = scalar_lea.vmem [#allocation4], %s519
        %v521 = vld [vmem:[%s520] sm:$0x1]
        %s522 = sadd.s32 %s500, 2
        %s523 = sshra.s32 %s522, 7
        %s524 = sand.u32 %s522, 127
        %s525 = sadd.s32 %s523, %s32
        %s526 = smul.u32 %s525, 128
        %s527 = sshra.s32 %s522, 7
        %s528 = sand.u32 %s522, 127
        %s529 = sadd.s32 %s526, %s528
        %s530 = sld [smem:[#allocation3 + %s529]]
        %s531 = scalar_lea.vmem [#allocation4], %s530
        %v532 = vld [vmem:[%s531] sm:$0x1]
        %s533 = sadd.s32 %s500, 3
        %s534 = sshra.s32 %s533, 7
        %s535 = sand.u32 %s533, 127
        %s536 = sadd.s32 %s534, %s32
        %s537 = smul.u32 %s536, 128
        %s538 = sshra.s32 %s533, 7
        %s539 = sand.u32 %s533, 127
        %s540 = sadd.s32 %s537, %s539
        %s541 = sld [smem:[#allocation3 + %s540]]
        %s542 = scalar_lea.vmem [#allocation4], %s541
        %v543 = vld [vmem:[%s542] sm:$0x1]
        %s544 = sadd.s32 %s500, 4
        %s545 = sshra.s32 %s544, 7
        %s546 = sand.u32 %s544, 127
        %s547 = sadd.s32 %s545, %s32
        %s548 = smul.u32 %s547, 128
        %s549 = sshra.s32 %s544, 7
        %s550 = sand.u32 %s544, 127
        %s551 = sadd.s32 %s548, %s550
        %s552 = sld [smem:[#allocation3 + %s551]]
        %s553 = scalar_lea.vmem [#allocation4], %s552
        %v554 = vld [vmem:[%s553] sm:$0x1]
        %s555 = sadd.s32 %s500, 5
        %s556 = sshra.s32 %s555, 7
        %s557 = sand.u32 %s555, 127
        %s558 = sadd.s32 %s556, %s32
        %s559 = smul.u32 %s558, 128
        %s560 = sshra.s32 %s555, 7
        %s561 = sand.u32 %s555, 127
        %s562 = sadd.s32 %s559, %s561
        %s563 = sld [smem:[#allocation3 + %s562]]
        %s564 = scalar_lea.vmem [#allocation4], %s563
        %v565 = vld [vmem:[%s564] sm:$0x1]
        %s566 = sadd.s32 %s500, 6
        %s567 = sshra.s32 %s566, 7
        %s568 = sand.u32 %s566, 127
        %s569 = sadd.s32 %s567, %s32
        %s570 = smul.u32 %s569, 128
        %s571 = sshra.s32 %s566, 7
        %s572 = sand.u32 %s566, 127
        %s573 = sadd.s32 %s570, %s572
        %s574 = sld [smem:[#allocation3 + %s573]]
        %s575 = scalar_lea.vmem [#allocation4], %s574
        %v576 = vld [vmem:[%s575] sm:$0x1]
        %s577 = sadd.s32 %s500, 7
        %s578 = sshra.s32 %s577, 7
        %s579 = sand.u32 %s577, 127
        %s580 = sadd.s32 %s578, %s32
        %s581 = smul.u32 %s580, 128
        %s582 = sshra.s32 %s577, 7
        %s583 = sand.u32 %s577, 127
        %s584 = sadd.s32 %s581, %s583
        %s585 = sld [smem:[#allocation3 + %s584]]
        %s586 = scalar_lea.vmem [#allocation4], %s585
        %v587 = vld [vmem:[%s586] sm:$0x1]
        %v589 = vrot.slane %v521, 7
        %v592 = vrot.slane %v532, 6
        %v595 = vrot.slane %v543, 5
        %v598 = vrot.slane %v554, 4
        %v601 = vrot.slane %v565, 3
        %v604 = vrot.slane %v576, 2
        %v607 = vrot.slane %v587, 1
        %v609 = vsel %vm459, %v510, %v589
        %v610 = vsel %vm461, %v609, %v592
        %v611 = vsel %vm463, %v610, %v595
        %v612 = vsel %vm465, %v611, %v598
        %v613 = vsel %vm467, %v612, %v601
        %v614 = vsel %vm469, %v613, %v604
        %v615 = vsel %vm471, %v614, %v607
        %s616 = scalar_lea.vmem %s322, 8
        %v617 = vld [vmem:[%s616] sm:$0xff]
        %vm618 = vcmp.eq.s32.totalorder %v617, 1
        %v619 = vsel %vm618, 1, 0
        %620 = vset.pattern.permute.xlu0 0
        %621 = vperm.xlu0 %620, %v619
        %v622 = vpop.permute.xlu0 %621
        %vm623 = vcmp.eq.s32.totalorder %v622, 1
        %v624 = vsel %vm623, %v349, %v344
        %s625 = scalar_lea.vmem %s312, 8
        %v626 = vld [vmem:[%s625] sm:$0xff]
        %v627 = vadd.f32 %v615, %v624
        %v628 = vadd.f32 %v627, %v626
        %629 = vadd.xlane.f32.xlu0 %v628
        %v630 = vpop.xlane.xlu0 %629
        %v631 = vmul.f32 %v628, %v628
        %632 = vadd.xlane.f32.xlu0 %v631
        %v633 = vpop.xlane.xlu0 %632
        %v634 = vmul.f32 %v630, 0.0078125
        %v635 = vmul.f32 %v633, 0.0078125
        %v636 = vmul.f32 %v634, %v634
        %v637 = vsub.f32 %v635, %v636
        %v638 = vadd.f32 %v637, 1e-12
        %v639 = vrsqrt.pop %v638
        %v640 = vsub.f32 %v628, %v634
        %v641 = vmul.f32 %v640, %v639
        %v642 = vmul.f32 %v641, %v331
        %v643 = vadd.f32 %v642, %v338
        %s644 = scalar_lea.vmem %s307, 8 [#allocation7]
        %645 = vst [vmem:[%s644] sm:$0xff] %v643
        %s646 = sand.u32 %s188, 1
        %s647 = scalar_lea.sflag [#allocation6], %s646
        %s648 = sand.u32 %s188, 1
        %s649 = smul.addr %s648, 16
        %s650 = scalar_lea.vmem [#allocation7], %s649
        // Predicated region
        $region49: #{bert_embeddings.1} parent=43 // pred_check
          %p651 = pneg %p198
        $region50: #{bert_embeddings.1} parent=43 // pred_check_branch
          %653 = sbr.rel (%p651) target = $region52
        $region51: #{bert_embeddings.1} parent=43 // pred_region
          %s654 = smul.u32 2, %s33
          %s656 = ssub.s32 256, 256
          %657 = vsyncadd %s647, %s656
          %s658 = smul.addr %s32, 2
          %s659 = sadd.s32 %s654, %s658
          %s660 = smul.addr %s659, 128
          %s661 = scalar_lea.hbm %s7, %s660
          %s662 = sshll.u32 %s650, 4
          %s663 = int_to_ptr.vmem [resolvable:$true] %s662
          %668 = dma.vmem_to_hbm [thread:$0]  %s663, 256, %s661, %s647, 128, 128, 8
        $region52: #{bert_embeddings.1} parent=43 // pred_fallthru
          _
      $region44: #{bert_embeddings.1} parent=5 // pred_fallthru
        _
      %p669 = scmp.le.s32.totalorder 2, %s23
      // Predicated region
      $region53: #{bert_embeddings.1} parent=5 // pred_check
        %p670 = pneg %p669
      $region54: #{bert_embeddings.1} parent=5 // pred_check_branch
        %672 = sbr.rel (%p670) target = $region56
      $region55: #{bert_embeddings.1} parent=5 // pred_region
        %s673 = ssub.s32 %s23, 2
        // Predicated region
        $region57: #{bert_embeddings.1} parent=55 // pred_check
          %p674 = pneg %p204
        $region58: #{bert_embeddings.1} parent=55 // pred_check_branch
          %676 = sbr.rel (%p674) target = $region60
        $region59: #{bert_embeddings.1} parent=55 // pred_region
          %s677 = sand.u32 %s189, 1
          %s678 = scalar_lea.sflag [#allocation6], %s677
          %s679 = sand.u32 %s189, 1
          %s680 = smul.addr %s679, 16
          %s681 = scalar_lea.vmem [#allocation7], %s680
          %682 = dma.done %s678, 256
        $region60: #{bert_embeddings.1} parent=55 // pred_fallthru
          _
      $region56: #{bert_embeddings.1} parent=5 // pred_fallthru
        _
    $region6: #{bert_embeddings.1} parent=1 // loop_footer
      %s27 = sadd.s32 1, %s23
    $region7: #{bert_embeddings.1} parent=1 // loop_footer_branch
      %22 = sbr.rel target = $region3
    $region8: #{bert_embeddings.1} parent=1 // loop_exit
      _
    %683 = vsyncpa [#allocation5], 1
    %s684 = scalar_lea.sflag [#allocation5], 1
    %685 = vsyncpa %s684, 1
    %686 = vsyncpa [#allocation6], 1
    %s687 = scalar_lea.sflag [#allocation6], 1
    %688 = vsyncpa %s687, 1

</llo_original>
